<compile_context>
chip_gen: v7x
topology: tpu7x:2x2x1
jax: 0.10.0
libtpu: 0.0.40
codegen_flags: <defaults>
</compile_context>

<pallas_src>
import functools

import jax
import jax.numpy as jnp
import numpy as np
from jax import lax
from jax.experimental import pallas as pl
from jax.experimental.pallas import tpu as pltpu

_LANE = 128
_SUBLANE = 8


def _round_up(x, m):
    return (x + m - 1) // m * m


def _vmem_capacity_bytes():
    try:
        return int(pltpu.get_tpu_info().vmem_capacity_bytes)
    except Exception:
        return 64 * 1024 * 1024  # conservative: v7x per-TC physical VMEM


def _num_tensorcores():
    # v7x has 2 TensorCores per chip; v5e/v6e have 1.
    try:
        kind = jax.devices()[0].device_kind.lower()
        if "v7" in kind or "7x" in kind:
            return 2
    except Exception:
        pass
    return 1


def _qnet_kernel(x_ref, w1_ref, b1_ref, w2t_ref, b2t_ref, ot_ref, *, vpu_layer1):
    """One batch tile: out_T = W2 @ relu(x @ W1 + b1)^T + b2 (f32 accumulate)."""
    TB = x_ref.shape[0]
    S = x_ref.shape[1]
    Hp = w1_ref.shape[1]

    if vpu_layer1:
        # K = S is tiny (e.g. 4): do layer 1 on the VPU as S broadcast-FMA
        # steps, keeping the MXU free for the lane-dense second layer.
        h = jnp.broadcast_to(b1_ref[...], (TB, Hp)).astype(jnp.float32)
        for k in range(S):  # static unrolled loop, S is a compile-time constant
            h = h + (x_ref[:, k:k + 1].astype(jnp.float32)
                     * w1_ref[k:k + 1, :].astype(jnp.float32))
    else:
        h = jnp.dot(x_ref[...], w1_ref[...], preferred_element_type=jnp.float32)
        h = h + b1_ref[...]
    h = jnp.maximum(h, 0.0)

    # Layer 2, transposed output: (Ap8, Hp) x (TB, Hp) contracting H -> (Ap8, TB).
    out_t = lax.dot_general(
        w2t_ref[...], h.astype(w2t_ref.dtype),
        dimension_numbers=(((1,), (1,)), ((), ())),
        preferred_element_type=jnp.float32)
    ot_ref[...] = (out_t + b2t_ref[...]).astype(ot_ref.dtype)


def prepare_qnet_params(w1, b1, w2, b2, *, compute_dtype=jnp.float32):
    """Pad/cast params ONCE into the kernel-resident layout (hot-path free).

    w1: (S, H), b1: (H,), w2: (H, A), b2: (A,)  [weights already x @ W layout].
    Returns a dict with H lane-padded (128) and A sublane-padded (8), W2 stored
    transposed (A, H) for the batch-last output matmul.  Biases stay f32.
    """
    compute_dtype = jnp.dtype(compute_dtype)
    S, H = w1.shape
    A = w2.shape[1]
    Hp = _round_up(H, _LANE)
    Ap8 = _round_up(A, _SUBLANE)

    w1p = jnp.zeros((S, Hp), compute_dtype).at[:, :H].set(w1.astype(compute_dtype))
    b1p = jnp.zeros((1, Hp), jnp.float32).at[0, :H].set(
        jnp.reshape(b1, (-1,)).astype(jnp.float32))
    w2tp = jnp.zeros((Ap8, Hp), compute_dtype).at[:A, :H].set(
        w2.T.astype(compute_dtype))
    b2tp = jnp.zeros((Ap8, 1), jnp.float32).at[:A, 0].set(
        jnp.reshape(b2, (-1,)).astype(jnp.float32))
    return {"w1": w1p, "b1": b1p, "w2t": w2tp, "b2t": b2tp,
            "state_dim": S, "action_dim": A}


def qnet_apply(params, x, *, num_tiles=None, transposed_output=False):
    """Fused forward with pre-padded params.  x: (B, S) -> (B, A) f32.

    With transposed_output=True returns the raw (round_up(A,8), Bp) f32 buffer
    (batch-last, padded) so DQN consumers (argmax / TD targets) can index it
    lazily without any extra layout op.
    """
    w1p, b1p, w2tp, b2tp = params["w1"], params["b1"], params["w2t"], params["b2t"]
    A = params["action_dim"]
    compute_dtype = jnp.dtype(w1p.dtype)

    B, S = x.shape
    assert S == params["state_dim"]
    Hp = w1p.shape[1]
    Ap8 = w2tp.shape[0]
    cd = compute_dtype.itemsize

    # --- batch tiling -------------------------------------------------------
    # v5e/v6e (1 TC): one big tile -> no serial-grid per-step overhead.
    # v7x (2 TCs): an even number of lane-dense tiles so "parallel" uses both
    # cores without a 2+1 style tail imbalance.  Small batches: single tile.
    if num_tiles is None:
        num_tiles = _num_tensorcores()
    if num_tiles > 1 and B < num_tiles * _LANE:
        num_tiles = 1

    def _tiling(n):
        if n <= 1:
            bp = _round_up(B, _SUBLANE)
            return 1, bp, bp
        bp = _round_up(B, _LANE * n)
        return n, bp, bp // n

    def _tile_vmem_bytes(tb):
        return (2 * tb * S * cd                          # x stream (double-buffered)
                + 2 * Ap8 * tb * 4                       # out_T stream (double-buffered)
                + (S * Hp + Ap8 * Hp) * cd               # resident weights (single-buffered)
                + (Hp + Ap8) * 4                         # resident biases
                + tb * Hp * 4)                           # h intermediate (f32)

    vmem_budget = int(0.75 * _vmem_capacity_bytes())
    num_tiles, Bp, TB = _tiling(num_tiles)
    while _tile_vmem_bytes(TB) > vmem_budget and TB > _LANE:
        num_tiles, Bp, TB = _tiling(max(2, num_tiles * 2))
    grid = (Bp // TB,)

    xp = x.astype(compute_dtype)
    if Bp != B:
        xp = jnp.zeros((Bp, S), compute_dtype).at[:B, :].set(xp)

    # Advisory cost estimate for XLA's scheduler inside a larger jitted step.
    flops = 2 * Bp * S * Hp + 2 * Bp * Hp * Ap8
    bytes_accessed = (xp.size * cd
                      + (w1p.size + w2tp.size) * cd
                      + (b1p.size + b2tp.size) * 4
                      + Ap8 * Bp * 4)
    cost = pl.CostEstimate(flops=flops, transcendentals=0,
                           bytes_accessed=bytes_accessed)

    vmem_limit = int(min(max(2 * _tile_vmem_bytes(TB), 8 * 1024 * 1024),
                         vmem_budget))

    kernel = functools.partial(_qnet_kernel, vpu_layer1=(S <= 16))

    out_t = pl.pallas_call(
        kernel,
        out_shape=jax.ShapeDtypeStruct((Ap8, Bp), jnp.float32),
        grid=grid,
        in_specs=[
            pl.BlockSpec((TB, S), lambda i: (i, 0)),      # x: streamed per tile
            pl.BlockSpec((S, Hp), lambda i: (0, 0)),      # W1: VMEM-resident
            pl.BlockSpec((1, Hp), lambda i: (0, 0)),      # b1: resident
            pl.BlockSpec((Ap8, Hp), lambda i: (0, 0)),    # W2^T: resident
            pl.BlockSpec((Ap8, 1), lambda i: (0, 0)),     # b2^T: resident
        ],
        out_specs=pl.BlockSpec((Ap8, TB), lambda i: (0, i)),  # batch-last output
        compiler_params=pltpu.CompilerParams(
            dimension_semantics=("parallel",),            # shards tiles over TCs on v7x
            vmem_limit_bytes=vmem_limit),
        cost_estimate=cost,
    )(xp, w1p, b1p, w2tp, b2tp)

    if transposed_output:
        return out_t  # (Ap8, Bp): consumer indexes [:A, :B] / argmaxes lazily
    # Only the small (Ap8, Bp) buffer is touched here (16x smaller than the
    # previous (Bp, 128) padded output), so this layout op is cheap plumbing.
    return out_t[:A, :B].T


def qnetwork_forward(x, w1, b1, w2, b2, *, compute_dtype=jnp.float32, **kw):
    """One-shot convenience wrapper (pads params per call; prefer prepare+apply)."""
    params = prepare_qnet_params(w1, b1, w2, b2, compute_dtype=compute_dtype)
    return qnet_apply(params, x, **kw)


def init_params(key, state_dim, action_dim, hidden_nodes=(64,)):
    """Deterministic init mimicking torch nn.Linear default (U[-1/sqrt(fan_in), ..])."""
    dims = [state_dim] + list(hidden_nodes) + [action_dim]
    params = []
    for i in range(len(dims) - 1):
        fan_in, fan_out = dims[i], dims[i + 1]
        key, kw_, kb_ = jax.random.split(key, 3)
        bound = 1.0 / np.sqrt(fan_in)
        w = jax.random.uniform(kw_, (fan_in, fan_out), jnp.float32, -bound, bound)
        b = jax.random.uniform(kb_, (fan_out,), jnp.float32, -bound, bound)
        params.append((w, b))
    return params


if __name__ == "__main__":
    key = jax.random.PRNGKey(0)
    state_dim, action_dim, hidden = 4, 2, 64

    key, kp = jax.random.split(key)
    (w1, b1), (w2, b2) = init_params(kp, state_dim, action_dim, [hidden])

    def ref_fwd(xx):
        return jnp.maximum(xx @ w1 + b1, 0.0) @ w2 + b2

    # Hot path: pad/cast params ONCE, reuse across calls.
    params_f32 = prepare_qnet_params(w1, b1, w2, b2, compute_dtype=jnp.float32)

    # 1) Small batch, f32, single tile -- strict check.
    key, kx = jax.random.split(key)
    x_small = jax.random.normal(kx, (8, state_dim), jnp.float32)
    out = jax.block_until_ready(qnet_apply(params_f32, x_small))
    assert out.shape == (8, action_dim)
    np.testing.assert_allclose(np.asarray(out), np.asarray(ref_fwd(x_small)),
                               rtol=1e-5, atol=1e-5)

    # 2) Larger batch, default (generation-auto) tiling, f32 -- strict check.
    key, kx = jax.random.split(key)
    x_big = jax.random.normal(kx, (640, state_dim), jnp.float32)
    out_big = jax.block_until_ready(qnet_apply(params_f32, x_big))
    assert out_big.shape == (640, action_dim)
    np.testing.assert_allclose(np.asarray(out_big), np.asarray(ref_fwd(x_big)),
                               rtol=1e-5, atol=1e-5)

    # 3) Explicit 2-tile path (v7x-style even split; serial-but-correct on
    #    single-TC parts), f32 -- strict check; exercises grid > 1 + batch pad.
    key, kx = jax.random.split(key)
    x_2t = jax.random.normal(kx, (256, state_dim), jnp.float32)
    out_2t = jax.block_until_ready(qnet_apply(params_f32, x_2t, num_tiles=2))
    assert out_2t.shape == (256, action_dim)
    np.testing.assert_allclose(np.asarray(out_2t), np.asarray(ref_fwd(x_2t)),
                               rtol=1e-5, atol=1e-5)

    # 4) bf16 MXU/weight path with f32 accumulation + f32 epilogue -- loose check.
    params_bf16 = prepare_qnet_params(w1, b1, w2, b2, compute_dtype=jnp.bfloat16)
    out_bf16 = jax.block_until_ready(qnet_apply(params_bf16, x_big))
    np.testing.assert_allclose(np.asarray(out_bf16), np.asarray(ref_fwd(x_big)),
                               rtol=5e-2, atol=5e-2)

    # 5) Transposed (batch-last) raw output for argmax-style consumers.
    out_t = jax.block_until_ready(
        qnet_apply(params_f32, x_big, transposed_output=True))
    acts = jnp.argmax(out_t[:action_dim, :640], axis=0)
    acts_ref = jnp.argmax(ref_fwd(x_big), axis=1)
    np.testing.assert_array_equal(np.asarray(acts), np.asarray(acts_ref))

    print("KERNEL_OK")
</pallas_src>

<mosaic_0001>
module attributes {stable_mosaic.version = 11 : i64} {
  func.func @_qnet_kernel(%arg0: i32, %arg1: memref<8x4xf32, #tpu.memory_space<vmem>>, %arg2: memref<4x128xf32, #tpu.memory_space<vmem>>, %arg3: memref<1x128xf32, #tpu.memory_space<vmem>>, %arg4: memref<8x128xf32, #tpu.memory_space<vmem>>, %arg5: memref<8x1xf32, #tpu.memory_space<vmem>>, %arg6: memref<8x8xf32, #tpu.memory_space<vmem>>) attributes {dimension_semantics = [#tpu.dimension_semantics<parallel>], iteration_bounds = array<i64: 1>, scalar_prefetch = 0 : i64, scratch_operands = 0 : i64, tpu.core_type = #tpu.core_type<tc>, window_params = [{transform_indices = @transform_0, window_bounds = array<i64: 8, 4>}, {pipeline_mode = #tpu.pipeline_mode<synchronous>, transform_indices = @transform_1, window_bounds = array<i64: 4, 128>}, {pipeline_mode = #tpu.pipeline_mode<synchronous>, transform_indices = @transform_2, window_bounds = array<i64: 1, 128>}, {pipeline_mode = #tpu.pipeline_mode<synchronous>, transform_indices = @transform_3, window_bounds = array<i64: 8, 128>}, {pipeline_mode = #tpu.pipeline_mode<synchronous>, transform_indices = @transform_4, window_bounds = array<i64: 8, 1>}, {transform_indices = @transform_5, window_bounds = array<i64: 8, 8>}]} {
    %c0 = arith.constant 0 : index
    %c0_0 = arith.constant 0 : index
    %0 = vector.load %arg3[%c0, %c0_0] : memref<1x128xf32, #tpu.memory_space<vmem>>, vector<1x128xf32>
    %1 = vector.shape_cast %0 : vector<1x128xf32> to vector<1x128xf32>
    %2 = vector.broadcast %1 : vector<1x128xf32> to vector<8x128xf32>
    %c0_1 = arith.constant 0 : index
    %c0_2 = arith.constant 0 : index
    %3 = vector.load %arg1[%c0_1, %c0_2] : memref<8x4xf32, #tpu.memory_space<vmem>>, vector<8x1xf32>
    %c0_3 = arith.constant 0 : index
    %c0_4 = arith.constant 0 : index
    %4 = vector.load %arg2[%c0_3, %c0_4] : memref<4x128xf32, #tpu.memory_space<vmem>>, vector<1x128xf32>
    %5 = vector.broadcast %3 : vector<8x1xf32> to vector<8x128xf32>
    %6 = vector.broadcast %4 : vector<1x128xf32> to vector<8x128xf32>
    %7 = arith.mulf %5, %6 : vector<8x128xf32>
    %8 = arith.addf %2, %7 : vector<8x128xf32>
    %c0_5 = arith.constant 0 : index
    %c1 = arith.constant 1 : index
    %9 = vector.load %arg1[%c0_5, %c1] : memref<8x4xf32, #tpu.memory_space<vmem>>, vector<8x1xf32>
    %c1_6 = arith.constant 1 : index
    %c0_7 = arith.constant 0 : index
    %10 = vector.load %arg2[%c1_6, %c0_7] : memref<4x128xf32, #tpu.memory_space<vmem>>, vector<1x128xf32>
    %11 = vector.broadcast %9 : vector<8x1xf32> to vector<8x128xf32>
    %12 = vector.broadcast %10 : vector<1x128xf32> to vector<8x128xf32>
    %13 = arith.mulf %11, %12 : vector<8x128xf32>
    %14 = arith.addf %8, %13 : vector<8x128xf32>
    %c0_8 = arith.constant 0 : index
    %c2 = arith.constant 2 : index
    %15 = vector.load %arg1[%c0_8, %c2] : memref<8x4xf32, #tpu.memory_space<vmem>>, vector<8x1xf32>
    %c2_9 = arith.constant 2 : index
    %c0_10 = arith.constant 0 : index
    %16 = vector.load %arg2[%c2_9, %c0_10] : memref<4x128xf32, #tpu.memory_space<vmem>>, vector<1x128xf32>
    %17 = vector.broadcast %15 : vector<8x1xf32> to vector<8x128xf32>
    %18 = vector.broadcast %16 : vector<1x128xf32> to vector<8x128xf32>
    %19 = arith.mulf %17, %18 : vector<8x128xf32>
    %20 = arith.addf %14, %19 : vector<8x128xf32>
    %c0_11 = arith.constant 0 : index
    %c3 = arith.constant 3 : index
    %21 = vector.load %arg1[%c0_11, %c3] : memref<8x4xf32, #tpu.memory_space<vmem>>, vector<8x1xf32>
    %c3_12 = arith.constant 3 : index
    %c0_13 = arith.constant 0 : index
    %22 = vector.load %arg2[%c3_12, %c0_13] : memref<4x128xf32, #tpu.memory_space<vmem>>, vector<1x128xf32>
    %23 = vector.broadcast %21 : vector<8x1xf32> to vector<8x128xf32>
    %24 = vector.broadcast %22 : vector<1x128xf32> to vector<8x128xf32>
    %25 = arith.mulf %23, %24 : vector<8x128xf32>
    %26 = arith.addf %20, %25 : vector<8x128xf32>
    %cst = arith.constant 0.000000e+00 : f32
    %27 = vector.broadcast %cst : f32 to vector<8x128xf32>
    %28 = arith.maximumf %26, %27 : vector<8x128xf32>
    %c0_14 = arith.constant 0 : index
    %c0_15 = arith.constant 0 : index
    %29 = vector.load %arg4[%c0_14, %c0_15] : memref<8x128xf32, #tpu.memory_space<vmem>>, vector<8x128xf32>
    %cst_16 = arith.constant dense<0.000000e+00> : vector<8x8xf32>
    %30 = tpu.matmul %29, %28, %cst_16 {dimension_numbers = #tpu.dot_dimension_numbers<[1], [1], [0], [0], [0, 0, 1, 0], [], []>} : vector<8x128xf32>, vector<8x128xf32>, vector<8x8xf32> -> vector<8x8xf32>
    %c0_17 = arith.constant 0 : index
    %c0_18 = arith.constant 0 : index
    %31 = vector.load %arg5[%c0_17, %c0_18] : memref<8x1xf32, #tpu.memory_space<vmem>>, vector<8x1xf32>
    %32 = vector.broadcast %31 : vector<8x1xf32> to vector<8x8xf32>
    %33 = arith.addf %30, %32 : vector<8x8xf32>
    %c0_19 = arith.constant 0 : index
    %c0_20 = arith.constant 0 : index
    %34 = vector.load %arg6[%c0_19, %c0_20] : memref<8x8xf32, #tpu.memory_space<vmem>>, vector<8x8xf32>
    tpu.vector_store %arg6[%c0_19, %c0_20], %33 {strides = array<i32>} : memref<8x8xf32, #tpu.memory_space<vmem>>, vector<8x8xf32>,
    return
  }
  func.func @transform_0(%arg0: i32) -> (i32, i32) {
    %c0_i32 = arith.constant 0 : i32
    %c0_i32_0 = arith.constant 0 : i32
    return %arg0, %c0_i32 : i32, i32
  }
  func.func @transform_1(%arg0: i32) -> (i32, i32) {
    %c0_i32 = arith.constant 0 : i32
    %c0_i32_0 = arith.constant 0 : i32
    %c0_i32_1 = arith.constant 0 : i32
    return %c0_i32, %c0_i32_0 : i32, i32
  }
  func.func @transform_2(%arg0: i32) -> (i32, i32) {
    %c0_i32 = arith.constant 0 : i32
    %c0_i32_0 = arith.constant 0 : i32
    %c0_i32_1 = arith.constant 0 : i32
    return %c0_i32, %c0_i32_0 : i32, i32
  }
  func.func @transform_3(%arg0: i32) -> (i32, i32) {
    %c0_i32 = arith.constant 0 : i32
    %c0_i32_0 = arith.constant 0 : i32
    %c0_i32_1 = arith.constant 0 : i32
    return %c0_i32, %c0_i32_0 : i32, i32
  }
  func.func @transform_4(%arg0: i32) -> (i32, i32) {
    %c0_i32 = arith.constant 0 : i32
    %c0_i32_0 = arith.constant 0 : i32
    %c0_i32_1 = arith.constant 0 : i32
    return %c0_i32, %c0_i32_0 : i32, i32
  }
  func.func @transform_5(%arg0: i32) -> (i32, i32) {
    %c0_i32 = arith.constant 0 : i32
    %c0_i32_0 = arith.constant 0 : i32
    return %c0_i32, %arg0 : i32, i32
  }
}

</mosaic_0001>

<llo_original>
// kernel: tpu_custom_call.1
$region0: #{tpu_custom_call.1}
  #allocation0 [shape = 'u32[]', space=smem, size = 0x4, offset = 0x4, fixed_abs, tag = 'smem constant byte address 0x4 - core index']
  #allocation1 [shape = 'u32[144,128]{1,0:T(1,128)}', space=vmem, size = 0x12000, scoped, tag = 'internal scratch']
  %s0 = inlined_call_operand.vmem [shape: f32[8,4], index: 0, kind: input, shape index: {}]
  %s1 = inlined_call_operand.vmem [shape: f32[4,128], index: 1, kind: input, shape index: {}]
  %s2 = inlined_call_operand.vmem [shape: f32[1,128], index: 2, kind: input, shape index: {}]
  %s3 = inlined_call_operand.vmem [shape: f32[8,128], index: 3, kind: input, shape index: {}]
  %s4 = inlined_call_operand.vmem [shape: f32[8,1], index: 4, kind: input, shape index: {}]
  %s5 = inlined_call_operand.hbm [shape: f32[8,8], index: 5, kind: output, shape index: {}]
  %s6 = sld [smem:[#allocation0]]
  $region30: #{tpu_custom_call.1} parent=0
    _
  %s8 = ssub.s32 1, %s6
  %s9 = scalar_select 0, %s8, %s6
  $region1: #{tpu_custom_call.1} parent=0
    #allocation2 [shape = 'u8[4096]{0}', space=vmem, size = 0x1000, scoped, tag = 'output window, operand 0, single buffered']
    #allocation3 [shape = 's32[1]{0}', space=sflag, size = 0x4, scoped, tag = 'scoped memory for tpu_custom_call.1']
    %10 = vsyncpa [#allocation3], 0
    // Predicated region
    $region2: #{tpu_custom_call.1} parent=1 // pred_check
      _
    $region3: #{tpu_custom_call.1} parent=1 // pred_check_branch
      %12 = sbr.rel (0) target = $region5
    $region4: #{tpu_custom_call.1} parent=1 // pred_region
      _
    $region5: #{tpu_custom_call.1} parent=1 // pred_fallthru
      _
    // Predicated region
    $region6: #{tpu_custom_call.1} parent=1 // pred_check
      _
    $region7: #{tpu_custom_call.1} parent=1 // pred_check_branch
      %14 = sbr.rel (0) target = $region9
    $region8: #{tpu_custom_call.1} parent=1 // pred_region
      _
    $region9: #{tpu_custom_call.1} parent=1 // pred_fallthru
      _
    // Predicated region
    $region10: #{tpu_custom_call.1} parent=1 // pred_check
      _
    $region11: #{tpu_custom_call.1} parent=1 // pred_check_branch
      %16 = sbr.rel (0) target = $region13
    $region12: #{tpu_custom_call.1} parent=1 // pred_region
      _
    $region13: #{tpu_custom_call.1} parent=1 // pred_fallthru
      _
    // Predicated region
    $region14: #{tpu_custom_call.1} parent=1 // pred_check
      _
    $region15: #{tpu_custom_call.1} parent=1 // pred_check_branch
      %18 = sbr.rel (0) target = $region17
    $region16: #{tpu_custom_call.1} parent=1 // pred_region
      _
    $region17: #{tpu_custom_call.1} parent=1 // pred_fallthru
      _
    // Predicated region
    $region18: #{tpu_custom_call.1} parent=1 // pred_check
      _
    $region19: #{tpu_custom_call.1} parent=1 // pred_check_branch
      %20 = sbr.rel (0) target = $region21
    $region20: #{tpu_custom_call.1} parent=1 // pred_region
      _
    $region21: #{tpu_custom_call.1} parent=1 // pred_fallthru
      _
    %v21 = vld [vmem:[%s2] sm:$0x1]
    %v23 = vlaneseq
    %v24 = vshrl.u32 %v23, 7
    %v25 = vsub.s32 0, %v24
    %v26 = vrot.slane %v21, %v25
    %v28 = vld [vmem:[%s0] sm:$0xff]
    %v29 = vld [vmem:[%s1] sm:$0x1]
    %31 = vset.pattern.permute.xlu0 0
    %32 = vperm.xlu0 %31, %v28
    %v33 = vpop.permute.xlu0 %32
    %v35 = vlaneseq
    %v36 = vshrl.u32 %v35, 7
    %v37 = vsub.s32 0, %v36
    %v38 = vrot.slane %v29, %v37
    %v39 = vmul.f32 %v33, %v38
    %v40 = vadd.f32 %v26, %v39
    %v41 = vld [vmem:[%s1 + $0x1] sm:$0x1]
    %42 = vset.pattern.permute.xlu0 1
    %43 = vperm.xlu0 %42, %v28
    %v44 = vpop.permute.xlu0 %43
    %v46 = vlaneseq
    %v47 = vshrl.u32 %v46, 7
    %v48 = vsub.s32 0, %v47
    %v49 = vrot.slane %v41, %v48
    %v50 = vmul.f32 %v44, %v49
    %v51 = vadd.f32 %v40, %v50
    %v52 = vld [vmem:[%s1 + $0x2] sm:$0x1]
    %53 = vset.pattern.permute.xlu0 2
    %54 = vperm.xlu0 %53, %v28
    %v55 = vpop.permute.xlu0 %54
    %v57 = vlaneseq
    %v58 = vshrl.u32 %v57, 7
    %v59 = vsub.s32 0, %v58
    %v60 = vrot.slane %v52, %v59
    %v61 = vmul.f32 %v55, %v60
    %v62 = vadd.f32 %v51, %v61
    %v63 = vld [vmem:[%s1 + $0x3] sm:$0x1]
    %64 = vset.pattern.permute.xlu0 3
    %65 = vperm.xlu0 %64, %v28
    %v66 = vpop.permute.xlu0 %65
    %v68 = vlaneseq
    %v69 = vshrl.u32 %v68, 7
    %v70 = vsub.s32 0, %v69
    %v71 = vrot.slane %v63, %v70
    %v72 = vmul.f32 %v66, %v71
    %v73 = vadd.f32 %v62, %v72
    %v74 = vmax.f32 %v73, 0.0
    %v75 = vld [vmem:[%s3] sm:$0xff]
    %v76 = vld [vmem:[%s4] sm:$0xff]
    %78 = vset.pattern.permute.xlu0 0
    %79 = vperm.xlu0 %78, %v76
    %v80 = vpop.permute.xlu0 %79
    %82 = vmatprep.subr.mxu0 0.0
    %83 = vmatpush1.xpose.msra.mxu0 %v74
    %84 = vmatprep.subr.mxu0 0.0
    %85 = vmatpush1.xpose.msra.mxu0 0.0
    %86 = vmatprep.subr.mxu0 0.0
    %87 = vmatpush1.xpose.msra.mxu0 0.0
    %88 = vmatprep.subr.mxu0 0.0
    %89 = vmatpush1.xpose.msra.mxu0 0.0
    %90 = vmatprep.subr.mxu0 0.0
    %91 = vmatpush1.xpose.msra.mxu0 0.0
    %92 = vmatprep.subr.mxu0 0.0
    %93 = vmatpush1.xpose.msra.mxu0 0.0
    %94 = vmatprep.subr.mxu0 0.0
    %95 = vmatpush1.xpose.msra.mxu0 0.0
    %96 = vmatprep.subr.mxu0 0.0
    %97 = vmatpush1.xpose.msra.mxu0 0.0
    %98 = vmatprep.subr.mxu0 0.0
    %99 = vmatpush1.xpose.msra.mxu0 0.0
    %100 = vmatprep.subr.mxu0 0.0
    %101 = vmatpush1.xpose.msra.mxu0 0.0
    %102 = vmatprep.subr.mxu0 0.0
    %103 = vmatpush1.xpose.msra.mxu0 0.0
    %104 = vmatprep.subr.mxu0 0.0
    %105 = vmatpush1.xpose.msra.mxu0 0.0
    %106 = vmatprep.subr.mxu0 0.0
    %107 = vmatpush1.xpose.msra.mxu0 0.0
    %108 = vmatprep.subr.mxu0 0.0
    %109 = vmatpush1.xpose.msra.mxu0 0.0
    %110 = vmatprep.subr.mxu0 0.0
    %111 = vmatpush1.xpose.msra.mxu0 0.0
    %112 = vmatprep.subr.mxu0 0.0
    %113 = vmatpush1.xpose.msra.mxu0 0.0
    %114 = vmatprep.subr.mxu0 0.0
    %115 = vmatpush1.xpose.msra.mxu0 0.0
    %116 = vmatprep.subr.mxu0 0.0
    %117 = vmatpush1.xpose.msra.mxu0 0.0
    %118 = vmatprep.subr.mxu0 0.0
    %119 = vmatpush1.xpose.msra.mxu0 0.0
    %120 = vmatprep.subr.mxu0 0.0
    %121 = vmatpush1.xpose.msra.mxu0 0.0
    %122 = vmatprep.subr.mxu0 0.0
    %123 = vmatpush1.xpose.msra.mxu0 0.0
    %124 = vmatprep.subr.mxu0 0.0
    %125 = vmatpush1.xpose.msra.mxu0 0.0
    %126 = vmatprep.subr.mxu0 0.0
    %127 = vmatpush1.xpose.msra.mxu0 0.0
    %128 = vmatprep.subr.mxu0 0.0
    %129 = vmatpush1.xpose.msra.mxu0 0.0
    %130 = vmatprep.subr.mxu0 0.0
    %131 = vmatpush1.xpose.msra.mxu0 0.0
    %132 = vmatprep.subr.mxu0 0.0
    %133 = vmatpush1.xpose.msra.mxu0 0.0
    %134 = vmatprep.subr.mxu0 0.0
    %135 = vmatpush1.xpose.msra.mxu0 0.0
    %136 = vmatprep.subr.mxu0 0.0
    %137 = vmatpush1.xpose.msra.mxu0 0.0
    %138 = vmatprep.subr.mxu0 0.0
    %139 = vmatpush1.xpose.msra.mxu0 0.0
    %140 = vmatprep.subr.mxu0 0.0
    %141 = vmatpush1.xpose.msra.mxu0 0.0
    %142 = vmatprep.subr.mxu0 0.0
    %143 = vmatpush1.xpose.msra.mxu0 0.0
    %144 = vmatprep.subr.mxu0 0.0
    %145 = vmatpush1.xpose.msra.mxu0 0.0
    %146 = vmatprep.mubr.f32.mxu0 0.0
    %147 = vmatmul.mubr.f32.gmra.mrb[0].mxu0 %v75
    %v148 = vpop.f32.mrb[0].mxu0
    %v149 = vadd.f32 %v80, %v148
    %v150 = vpop.f32.mrb[0].mxu0
    %151 = vdwg.mxu0
    %vm152 = vcmask 64512
    %153 = vst.msk [vmem:[#allocation2] sm:$0xff] %vm152, %v149
    // Predicated region
    $region22: #{tpu_custom_call.1} parent=1 // pred_check
      _
    $region23: #{tpu_custom_call.1} parent=1 // pred_check_branch
      %155 = sbr.rel (0) target = $region25
    $region24: #{tpu_custom_call.1} parent=1 // pred_region
      %s157 = ssub.s32 128, 128
      %158 = vsyncadd [#allocation3], %s157
      %s160 = sshll.u32 [#allocation2], 4
      %s161 = int_to_ptr.vmem [resolvable:$true] %s160
      %163 = dma.vmem_to_hbm [thread:$0]  %s161, 128, %s5, [#allocation3]
    $region25: #{tpu_custom_call.1} parent=1 // pred_fallthru
      _
    // Predicated region
    $region26: #{tpu_custom_call.1} parent=1 // pred_check
      _
    $region27: #{tpu_custom_call.1} parent=1 // pred_check_branch
      %165 = sbr.rel (0) target = $region29
    $region28: #{tpu_custom_call.1} parent=1 // pred_region
      %166 = dma.done [#allocation3], 128
    $region29: #{tpu_custom_call.1} parent=1 // pred_fallthru
      _
    %167 = vsyncpa [#allocation3], 1

</llo_original>
